<compile_context>
chip_gen: v6e
topology: v6e:2x2x1
jax: 0.10.0
libtpu: 0.0.40
codegen_flags: <defaults>
</compile_context>

<pallas_src>
import functools

import numpy as np
import jax
import jax.numpy as jnp
from jax.experimental import pallas as pl
from jax.experimental.pallas import tpu as pltpu

_LANE = 128


def _rdown(x, m):
    return (x // m) * m


def _rup(x, m):
    return ((x + m - 1) // m) * m


# ----------------------------- kernel bodies ---------------------------------

def _alpha_geodesic(a, b, alpha, lmd):
    """Trace-time-specialized alpha_geodesic (alpha, lmd are Python floats).

    The generic x**p path lowers to exp(log(x)) on the single EUP slot, so the
    common exponents (p = 1, 2, 0.5, -1) get explicit VPU-only fast paths.
    """
    a_ = a + 1e-12
    b_ = b + 1e-12
    if alpha == 1:
        return jnp.exp((1.0 - lmd) * jnp.log(a_) + lmd * jnp.log(b_))
    elif alpha >= 1e9:
        return jnp.minimum(a_, b_)
    elif alpha <= -1e9:
        return jnp.maximum(a_, b_)
    else:
        p = (1.0 - alpha) / 2.0
        if p == 1.0:            # alpha == -1 (default): plain mixture, no pow at all
            g = (1.0 - lmd) * a_ + lmd * b_
        elif p == 2.0:          # alpha == -3
            g = jnp.sqrt((1.0 - lmd) * (a_ * a_) + lmd * (b_ * b_))
        elif p == 0.5:          # alpha == 0
            s = (1.0 - lmd) * jnp.sqrt(a_) + lmd * jnp.sqrt(b_)
            g = s * s
        elif p == -1.0:         # alpha == 3: weighted harmonic mean
            g = 1.0 / ((1.0 - lmd) / a_ + lmd / b_)
        else:
            g = ((1.0 - lmd) * a_ ** p + lmd * b_ ** p) ** (1.0 / p)
        if alpha > 0:
            # TODO(synk): torch checks (g == 0) globally over the whole tensor
            # before substituting min(a_, b_); here the fallback is applied
            # per element (default alpha = -1 never reaches this branch).
            g = jnp.where(g == 0, jnp.minimum(a_, b_), g)
        return g


def _div_block(x_ref, t_ref, alpha, lmd):
    # cast inside the kernel so bf16/fp16 inputs keep half the HBM traffic
    a = x_ref[...].astype(jnp.float32)
    b = t_ref[...].astype(jnp.float32)
    g = _alpha_geodesic(a, b, alpha, lmd)
    # exact divide (recip + VPU refine) keeps parity with the reference; the
    # kernel is HBM-bound on v5e/v6e so an approx recip buys nothing there.
    return a * jnp.log(a / g + 1e-12)


def _sum_mid_kernel(x_ref, t_ref, o_ref, *, alpha, lmd, b_total, tb, nb):
    """Blocks (TPre, TB, TPost); reduce over the middle (B) axis."""
    div = _div_block(x_ref, t_ref, alpha, lmd)
    if b_total % tb != 0:   # ragged last B tile: zero OOB rows before summing
        rows = (jax.lax.broadcasted_iota(jnp.int32, div.shape, 1)
                + pl.program_id(2) * tb)
        div = jnp.where(rows < b_total, div, 0.0)
    partial = jnp.sum(div, axis=1, keepdims=True)      # (TPre, 1, TPost)
    if nb == 1:
        o_ref[...] = partial
    else:
        bi = pl.program_id(2)

        @pl.when(bi == 0)
        def _():
            o_ref[...] = partial                        # write-on-first

        @pl.when(bi != 0)
        def _():
            o_ref[...] += partial


def _sum_lane_kernel(x_ref, t_ref, o_ref, *, alpha, lmd, b_total, tb, nb):
    """Blocks (TPre, TB); `dim` is the last axis -> reduce over lanes."""
    div = _div_block(x_ref, t_ref, alpha, lmd)
    if b_total % tb != 0:
        lanes = (jax.lax.broadcasted_iota(jnp.int32, div.shape, 1)
                 + pl.program_id(1) * tb)
        div = jnp.where(lanes < b_total, div, 0.0)
    partial = jnp.sum(div, axis=1, keepdims=True)       # (TPre, 1)
    if nb == 1:
        o_ref[...] = partial
    else:
        bi = pl.program_id(1)

        @pl.when(bi == 0)
        def _():
            o_ref[...] = partial

        @pl.when(bi != 0)
        def _():
            o_ref[...] += partial


def _elem_kernel(x_ref, t_ref, o_ref, *, alpha, lmd):
    o_ref[...] = _div_block(x_ref, t_ref, alpha, lmd).astype(o_ref.dtype)


# ----------------------------- tiling helpers --------------------------------

def _vmem_budget_and_limit():
    """(pipelined-block byte budget per step, vmem_limit_bytes), per generation."""
    cap = 64 * 1024 * 1024                       # conservative default (v7x per-TC)
    try:
        info = pltpu.get_tpu_info()
        cap = int(getattr(info, "vmem_capacity_bytes", cap)) or cap
    except Exception:
        pass
    budget = max(8 << 20, min(48 << 20, int(cap * 0.40)))
    limit = max(budget + (8 << 20), min(int(cap * 0.75), 112 << 20))
    return budget, int(limit)


def _tiles_mid(pre, B, post, per_elem, budget, sublane):
    """(TPre, TB, TPost) for the (pre, B, post) layout, reduce over B."""
    max_elems = max(1, budget // per_elem)
    tb_min = B if B <= sublane else sublane
    # Lane axis: keep whole `post` rows (contiguous bursts) whenever they fit;
    # otherwise tile in multiples of 128 (ragged last tile needs no mask).
    if post * tb_min <= max_elems:
        tpost = post
    else:
        tpost = min(post, max(_LANE, _rdown(max_elems // tb_min, _LANE)))
    rows = max(1, max_elems // tpost)            # how many (pre, b) rows fit
    if B <= rows:
        tb = B                                   # whole reduction axis: no accumulation
        tpre = min(pre, max(1, rows // B))
    else:
        tpre = 1                                 # accumulate across B grid tiles
        tb = max(tb_min, min(_rdown(rows, sublane), _rup(B, sublane)))
    return tpre, tb, tpost


def _tiles_last(pre, B, per_elem, budget, sublane):
    """(TPre, TB) for the (pre, B) layout, reduce over the lane axis B."""
    max_elems = max(1, budget // per_elem)
    pre_min = pre if pre <= sublane else sublane
    if B * pre_min <= max_elems:
        tb = B
        tpre = max_elems // B
        tpre = pre if tpre >= pre else max(pre_min, _rdown(tpre, sublane))
    else:
        tpre = pre_min
        tb = min(B, max(_LANE, _rdown(max_elems // tpre, _LANE)))
    return tpre, tb


# ------------------------------- public API -----------------------------------

def gs_div_loss(x, target, alpha=-1.0, lmd=0.5, dim=0, reduction="sum"):
    """JAX/Pallas equivalent of GSDivLoss.forward / gs_div."""
    assert 0.0 <= lmd <= 1.0
    assert x.shape == target.shape, "input and target must have the same shape"
    assert x.ndim >= 1
    shape = x.shape
    ndim = x.ndim
    d = dim + ndim if dim < 0 else dim
    assert 0 <= d < ndim

    out_dtype = jnp.promote_types(x.dtype, target.dtype)
    batch0 = shape[0]                      # 'batchmean' divides by the original first dim
    reduced = reduction in ("batchmean", "sum", "mean")

    pre = int(np.prod(shape[:d], dtype=np.int64)) if d > 0 else 1
    B = int(shape[d])
    post = int(np.prod(shape[d + 1:], dtype=np.int64)) if d < ndim - 1 else 1

    ix = jnp.dtype(x.dtype).itemsize
    it = jnp.dtype(target.dtype).itemsize
    oi = jnp.dtype(out_dtype).itemsize
    sublane = max(8, 32 // max(1, min(ix, it, oi)))
    # per-element VMEM charge per pipeline step: double-buffered inputs,
    # double-buffered output only for the elementwise path (the sum path's
    # f32 output tile is resident/tiny), plus ~3 f32 compute temporaries.
    per_elem = 2 * (ix + it) + 12 + (0 if reduced else 2 * oi)
    budget, vmem_limit = _vmem_budget_and_limit()

    if post > 1:
        # free row-major reshape: no transpose, no extra HBM pass
        x3 = x.reshape(pre, B, post)
        t3 = target.reshape(pre, B, post)
        tpre, tb, tpost = _tiles_mid(pre, B, post, per_elem, budget, sublane)
        n_pre, n_post, n_b = pl.cdiv(pre, tpre), pl.cdiv(post, tpost), pl.cdiv(B, tb)
        in_specs = [pl.BlockSpec((tpre, tb, tpost), lambda pi, si, bi: (pi, bi, si)),
                    pl.BlockSpec((tpre, tb, tpost), lambda pi, si, bi: (pi, bi, si))]
        if reduced:
            kernel = functools.partial(_sum_mid_kernel, alpha=alpha, lmd=lmd,
                                       b_total=B, tb=tb, nb=n_b)
            out = pl.pallas_call(
                kernel,
                out_shape=jax.ShapeDtypeStruct((pre, 1, post), jnp.float32),
                grid=(n_pre, n_post, n_b),
                in_specs=in_specs,
                out_specs=pl.BlockSpec((tpre, 1, tpost),
                                       lambda pi, si, bi: (pi, 0, si)),
                compiler_params=pltpu.CompilerParams(
                    dimension_semantics=("parallel", "parallel", "arbitrary"),
                    vmem_limit_bytes=vmem_limit),
            )(x3, t3)
            out = out.reshape(shape[:d] + shape[d + 1:])
        else:
            kernel = functools.partial(_elem_kernel, alpha=alpha, lmd=lmd)
            out = pl.pallas_call(
                kernel,
                out_shape=jax.ShapeDtypeStruct((pre, B, post), out_dtype),
                grid=(n_pre, n_post, n_b),
                in_specs=in_specs,
                out_specs=pl.BlockSpec((tpre, tb, tpost),
                                       lambda pi, si, bi: (pi, bi, si)),
                compiler_params=pltpu.CompilerParams(
                    dimension_semantics=("parallel", "parallel", "parallel"),
                    vmem_limit_bytes=vmem_limit),
            )(x3, t3)
            return out.reshape(shape)
    else:
        # `dim` is the last (non-trivial) axis: reduce over the lane axis
        x2 = x.reshape(pre, B)
        t2 = target.reshape(pre, B)
        tpre, tb = _tiles_last(pre, B, per_elem, budget, sublane)
        n_pre, n_b = pl.cdiv(pre, tpre), pl.cdiv(B, tb)
        in_specs = [pl.BlockSpec((tpre, tb), lambda pi, bi: (pi, bi)),
                    pl.BlockSpec((tpre, tb), lambda pi, bi: (pi, bi))]
        if reduced:
            kernel = functools.partial(_sum_lane_kernel, alpha=alpha, lmd=lmd,
                                       b_total=B, tb=tb, nb=n_b)
            out = pl.pallas_call(
                kernel,
                out_shape=jax.ShapeDtypeStruct((pre, 1), jnp.float32),
                grid=(n_pre, n_b),
                in_specs=in_specs,
                out_specs=pl.BlockSpec((tpre, 1), lambda pi, bi: (pi, 0)),
                compiler_params=pltpu.CompilerParams(
                    dimension_semantics=("parallel", "arbitrary"),
                    vmem_limit_bytes=vmem_limit),
            )(x2, t2)
            out = out.reshape(shape[:d] + shape[d + 1:])
        else:
            kernel = functools.partial(_elem_kernel, alpha=alpha, lmd=lmd)
            out = pl.pallas_call(
                kernel,
                out_shape=jax.ShapeDtypeStruct((pre, B), out_dtype),
                grid=(n_pre, n_b),
                in_specs=in_specs,
                out_specs=pl.BlockSpec((tpre, tb), lambda pi, bi: (pi, bi)),
                compiler_params=pltpu.CompilerParams(
                    dimension_semantics=("parallel", "parallel"),
                    vmem_limit_bytes=vmem_limit),
            )(x2, t2)
            return out.reshape(shape)

    # reduced-path epilogue
    if reduction == "batchmean":
        out = out / batch0
    elif reduction == "mean":
        out = out / B          # torch.mean(div, dim=dim): divide by shape[dim]
    return out.astype(out_dtype)


# ----------------------------- pure-JAX reference -----------------------------

def _ref_alpha_geodesic(a, b, alpha, lmd):
    a_ = a + 1e-12
    b_ = b + 1e-12
    if alpha == 1:
        return jnp.exp((1.0 - lmd) * jnp.log(a_) + lmd * jnp.log(b_))
    elif alpha >= 1e9:
        return jnp.minimum(a_, b_)
    elif alpha <= -1e9:
        return jnp.maximum(a_, b_)
    p = (1.0 - alpha) / 2.0
    g = ((1.0 - lmd) * a_ ** p + lmd * b_ ** p) ** (1.0 / p)
    if alpha > 0:
        g = jnp.where(jnp.any(g == 0), jnp.minimum(a_, b_), g)
    return g


def _gs_div_ref(x, target, alpha=-1.0, lmd=0.5, dim=0, reduction="sum"):
    a = x.astype(jnp.float32)
    b = target.astype(jnp.float32)
    g = _ref_alpha_geodesic(a, b, alpha, lmd)
    div = a * jnp.log(a / g + 1e-12)
    if reduction == "batchmean":
        return jnp.sum(div, axis=dim) / x.shape[0]
    if reduction == "sum":
        return jnp.sum(div, axis=dim)
    if reduction == "mean":
        return jnp.mean(div, axis=dim)
    return div


if __name__ == "__main__":
    key = jax.random.PRNGKey(0)
    k1, k2 = jax.random.split(key)
    shape = (2, 4, 16, 16)

    # positive "probability-like" inputs (module expects distributions)
    x = jax.nn.softmax(jax.random.normal(k1, shape), axis=0)
    t = jax.nn.softmax(jax.random.normal(k2, shape), axis=0)

    # default config: dim=0, reduction='sum'
    out_sum = jax.block_until_ready(
        gs_div_loss(x, t, alpha=-1.0, lmd=0.5, dim=0, reduction="sum"))
    ref_sum = _gs_div_ref(x, t, alpha=-1.0, lmd=0.5, dim=0, reduction="sum")
    assert out_sum.shape == ref_sum.shape == shape[1:]
    np.testing.assert_allclose(np.asarray(out_sum), np.asarray(ref_sum),
                               rtol=2e-5, atol=5e-6)

    # elementwise ('none')
    out_none = jax.block_until_ready(gs_div_loss(x, t, reduction="none"))
    ref_none = _gs_div_ref(x, t, reduction="none")
    assert out_none.shape == shape
    np.testing.assert_allclose(np.asarray(out_none), np.asarray(ref_none),
                               rtol=2e-5, atol=5e-6)

    # reduce over an inner axis (exercises the no-transpose (pre, B, post) path)
    xm = jax.nn.softmax(jax.random.normal(k1, shape), axis=1)
    tm = jax.nn.softmax(jax.random.normal(k2, shape), axis=1)
    out_mean = jax.block_until_ready(gs_div_loss(xm, tm, dim=1, reduction="mean"))
    ref_mean = _gs_div_ref(xm, tm, dim=1, reduction="mean")
    np.testing.assert_allclose(np.asarray(out_mean), np.asarray(ref_mean),
                               rtol=2e-5, atol=5e-6)

    # reduce over the last axis (exercises the lane-reduction path)
    xl = jax.nn.softmax(jax.random.normal(k1, shape), axis=-1)
    tl = jax.nn.softmax(jax.random.normal(k2, shape), axis=-1)
    out_bm = jax.block_until_ready(gs_div_loss(xl, tl, dim=-1, reduction="batchmean"))
    ref_bm = _gs_div_ref(xl, tl, dim=-1, reduction="batchmean")
    np.testing.assert_allclose(np.asarray(out_bm), np.asarray(ref_bm),
                               rtol=2e-5, atol=5e-6)

    print("KERNEL_OK")
</pallas_src>

<mosaic_0001>
module attributes {stable_mosaic.version = 11 : i64} {
  func.func @_sum_mid_kernel(%arg0: i32, %arg1: i32, %arg2: i32, %arg3: memref<1x2x1024xf32, #tpu.memory_space<vmem>>, %arg4: memref<1x2x1024xf32, #tpu.memory_space<vmem>>, %arg5: memref<1x1x1024xf32, #tpu.memory_space<vmem>>) attributes {dimension_semantics = [#tpu.dimension_semantics<parallel>, #tpu.dimension_semantics<parallel>, #tpu.dimension_semantics<arbitrary>], iteration_bounds = array<i64: 1, 1, 1>, scalar_prefetch = 0 : i64, scratch_operands = 0 : i64, tpu.core_type = #tpu.core_type<tc>, window_params = [{transform_indices = @transform_0, window_bounds = array<i64: 1, 2, 1024>}, {transform_indices = @transform_1, window_bounds = array<i64: 1, 2, 1024>}, {transform_indices = @transform_2, window_bounds = array<i64: 1, 1, 1024>}]} {
    %c0 = arith.constant 0 : index
    %c0_0 = arith.constant 0 : index
    %c0_1 = arith.constant 0 : index
    %0 = vector.load %arg3[%c0, %c0_0, %c0_1] : memref<1x2x1024xf32, #tpu.memory_space<vmem>>, vector<1x2x1024xf32>
    %c0_2 = arith.constant 0 : index
    %c0_3 = arith.constant 0 : index
    %c0_4 = arith.constant 0 : index
    %1 = vector.load %arg4[%c0_2, %c0_3, %c0_4] : memref<1x2x1024xf32, #tpu.memory_space<vmem>>, vector<1x2x1024xf32>
    %cst = arith.constant 9.99999996E-13 : f32
    %2 = vector.broadcast %cst : f32 to vector<1x2x1024xf32>
    %3 = arith.addf %0, %2 : vector<1x2x1024xf32>
    %cst_5 = arith.constant 9.99999996E-13 : f32
    %4 = vector.broadcast %cst_5 : f32 to vector<1x2x1024xf32>
    %5 = arith.addf %1, %4 : vector<1x2x1024xf32>
    %cst_6 = arith.constant 5.000000e-01 : f32
    %6 = vector.broadcast %cst_6 : f32 to vector<1x2x1024xf32>
    %7 = arith.mulf %6, %3 : vector<1x2x1024xf32>
    %cst_7 = arith.constant 5.000000e-01 : f32
    %8 = vector.broadcast %cst_7 : f32 to vector<1x2x1024xf32>
    %9 = arith.mulf %8, %5 : vector<1x2x1024xf32>
    %10 = arith.addf %7, %9 : vector<1x2x1024xf32>
    %11 = arith.divf %0, %10 : vector<1x2x1024xf32>
    %cst_8 = arith.constant 9.99999996E-13 : f32
    %12 = vector.broadcast %cst_8 : f32 to vector<1x2x1024xf32>
    %13 = arith.addf %11, %12 : vector<1x2x1024xf32>
    %14 = math.log %13 : vector<1x2x1024xf32>
    %15 = arith.mulf %0, %14 : vector<1x2x1024xf32>
    %cst_9 = arith.constant dense<0.000000e+00> : vector<1x1024xf32>
    %16 = vector.multi_reduction <add>, %15, %cst_9 [1] : vector<1x2x1024xf32> to vector<1x1024xf32>
    %17 = vector.shape_cast %16 : vector<1x1024xf32> to vector<1x1x1024xf32>
    %c0_10 = arith.constant 0 : index
    %c0_11 = arith.constant 0 : index
    %c0_12 = arith.constant 0 : index
    %18 = vector.load %arg5[%c0_10, %c0_11, %c0_12] : memref<1x1x1024xf32, #tpu.memory_space<vmem>>, vector<1x1x1024xf32>
    tpu.vector_store %arg5[%c0_10, %c0_11, %c0_12], %17 {strides = array<i32>} : memref<1x1x1024xf32, #tpu.memory_space<vmem>>, vector<1x1x1024xf32>,
    return
  }
  func.func @transform_0(%arg0: i32, %arg1: i32, %arg2: i32) -> (i32, i32, i32) {
    %c0_i32 = arith.constant 0 : i32
    return %arg0, %arg2, %arg1 : i32, i32, i32
  }
  func.func @transform_1(%arg0: i32, %arg1: i32, %arg2: i32) -> (i32, i32, i32) {
    %c0_i32 = arith.constant 0 : i32
    return %arg0, %arg2, %arg1 : i32, i32, i32
  }
  func.func @transform_2(%arg0: i32, %arg1: i32, %arg2: i32) -> (i32, i32, i32) {
    %c0_i32 = arith.constant 0 : i32
    %c0_i32_0 = arith.constant 0 : i32
    return %arg0, %c0_i32, %arg1 : i32, i32, i32
  }
}

</mosaic_0001>

<llo_original>
// kernel: tpu_custom_call.1
$region0: #{tpu_custom_call.1}
  #allocation0 [shape = 'u32[]', space=smem, size = 0x4, offset = 0x4, fixed_abs, tag = 'smem constant byte address 0x4 - core index']
  #allocation1 [shape = 'u32[144,128]{1,0:T(1,128)}', space=vmem, size = 0x12000, scoped, tag = 'internal scratch']
  %s0 = inlined_call_operand.hbm [shape: f32[1,2,1024], index: 0, kind: input, shape index: {}]
  %s1 = inlined_call_operand.hbm [shape: f32[1,2,1024], index: 1, kind: input, shape index: {}]
  %s2 = inlined_call_operand.hbm [shape: f32[1,1,1024], index: 2, kind: output, shape index: {}]
  %s3 = sld [smem:[#allocation0]]
  $region26: #{tpu_custom_call.1} parent=0
    _
  %s5 = ssub.s32 1, %s3
  %s6 = scalar_select 0, %s5, %s3
  $region1: #{tpu_custom_call.1} parent=0
    #allocation2 [shape = 'u8[8192]{0}', space=vmem, size = 0x2000, scoped, tag = 'input window, operand 0, single buffered']
    #allocation3 [shape = 's32[1]{0}', space=sflag, size = 0x4, scoped, tag = 'scoped memory for tpu_custom_call.1']
    #allocation4 [shape = 's32[1]{0}', space=sflag, size = 0x4, scoped, tag = 'scoped memory for tpu_custom_call.1']
    #allocation5 [shape = 'u8[8192]{0}', space=vmem, size = 0x2000, scoped, tag = 'input window, operand 1, single buffered']
    #allocation6 [shape = 's32[1]{0}', space=sflag, size = 0x4, scoped, tag = 'scoped memory for tpu_custom_call.1']
    #allocation7 [shape = 'u8[4096]{0}', space=vmem, size = 0x1000, scoped, tag = 'output window, operand 0, single buffered']
    %7 = vsyncpa [#allocation3], 0
    %8 = vsyncpa [#allocation6], 0
    %9 = vsyncpa [#allocation4], 0
    // Predicated region
    $region2: #{tpu_custom_call.1} parent=1 // pred_check
      _
    $region3: #{tpu_custom_call.1} parent=1 // pred_check_branch
      %11 = sbr.rel (0) target = $region5
    $region4: #{tpu_custom_call.1} parent=1 // pred_region
      %s13 = ssub.s32 256, 256
      %14 = vsyncadd [#allocation3], %s13
      %s16 = sshll.u32 [#allocation2], 4
      %s17 = int_to_ptr.vmem [resolvable:$true] %s16
      %19 = dma.hbm_to_vmem [thread:$0]  %s0, 256, %s17, [#allocation3]
    $region5: #{tpu_custom_call.1} parent=1 // pred_fallthru
      _
    // Predicated region
    $region6: #{tpu_custom_call.1} parent=1 // pred_check
      _
    $region7: #{tpu_custom_call.1} parent=1 // pred_check_branch
      %21 = sbr.rel (0) target = $region9
    $region8: #{tpu_custom_call.1} parent=1 // pred_region
      %s23 = ssub.s32 256, 256
      %24 = vsyncadd [#allocation6], %s23
      %s26 = sshll.u32 [#allocation5], 4
      %s27 = int_to_ptr.vmem [resolvable:$true] %s26
      %29 = dma.hbm_to_vmem [thread:$0]  %s1, 256, %s27, [#allocation6]
    $region9: #{tpu_custom_call.1} parent=1 // pred_fallthru
      _
    // Predicated region
    $region10: #{tpu_custom_call.1} parent=1 // pred_check
      _
    $region11: #{tpu_custom_call.1} parent=1 // pred_check_branch
      %31 = sbr.rel (0) target = $region13
    $region12: #{tpu_custom_call.1} parent=1 // pred_region
      %32 = dma.done [#allocation3], 256
    $region13: #{tpu_custom_call.1} parent=1 // pred_fallthru
      _
    // Predicated region
    $region14: #{tpu_custom_call.1} parent=1 // pred_check
      _
    $region15: #{tpu_custom_call.1} parent=1 // pred_check_branch
      %34 = sbr.rel (0) target = $region17
    $region16: #{tpu_custom_call.1} parent=1 // pred_region
      %35 = dma.done [#allocation6], 256
    $region17: #{tpu_custom_call.1} parent=1 // pred_fallthru
      _
    %v36 = vld [vmem:[#allocation2] sm:$0xff]
    %v37 = vld [vmem:[#allocation2 + $0x8] sm:$0xff]
    %v38 = vld [vmem:[#allocation5] sm:$0xff]
    %v39 = vld [vmem:[#allocation5 + $0x8] sm:$0xff]
    %v40 = vadd.f32 %v36, 1e-12
    %v41 = vadd.f32 %v37, 1e-12
    %v42 = vadd.f32 %v38, 1e-12
    %v43 = vadd.f32 %v39, 1e-12
    %v44 = vmul.f32 %v40, 0.5
    %v45 = vmul.f32 %v41, 0.5
    %v46 = vmul.f32 %v42, 0.5
    %v47 = vmul.f32 %v43, 0.5
    %v48 = vadd.f32 %v44, %v46
    %v49 = vadd.f32 %v45, %v47
    %v50 = vrcp.pop %v48
    %v51 = vmul.f32 %v36, %v50
    %v52 = vrcp.pop %v49
    %v53 = vmul.f32 %v37, %v52
    %v54 = vadd.f32 %v51, 1e-12
    %v55 = vadd.f32 %v53, 1e-12
    %v56 = vlog2.pop %v54
    %v57 = vmul.f32 %v56, 0.6931472
    %v58 = vlog2.pop %v55
    %v59 = vmul.f32 %v58, 0.6931472
    %v60 = vmul.f32 %v36, %v57
    %v61 = vmul.f32 %v37, %v59
    %v64 = vcombine.high %v60, %v60
    %v66 = vunpack.c.l.s4 1983009808
    %v67 = vunpack.c.0.s8 %v66
    %v68 = vlaneseq
    %v69 = vshrl.u32 %v68, 7
    %v70 = vsub.s32 %v67, %v69
    %v71 = vrot.slane %v60, %v70
    %v73 = vunpack.c.l.s4 1983009808
    %v74 = vunpack.c.0.s8 %v73
    %v75 = vlaneseq
    %v76 = vshrl.u32 %v75, 7
    %v77 = vsub.s32 %v74, %v76
    %v78 = vrot.slane %v64, %v77
    %v79 = vcombine.high %v71, %v71
    %v80 = vcombine.high %v78, %v78
    %v81 = vcombine.high %v61, %v61
    %v83 = vunpack.c.l.s4 1983009808
    %v84 = vunpack.c.0.s8 %v83
    %v85 = vlaneseq
    %v86 = vshrl.u32 %v85, 7
    %v87 = vsub.s32 %v84, %v86
    %v88 = vrot.slane %v61, %v87
    %v90 = vunpack.c.l.s4 1983009808
    %v91 = vunpack.c.0.s8 %v90
    %v92 = vlaneseq
    %v93 = vshrl.u32 %v92, 7
    %v94 = vsub.s32 %v91, %v93
    %v95 = vrot.slane %v81, %v94
    %v96 = vcombine.high %v88, %v88
    %v97 = vcombine.high %v95, %v95
    %vm106 = vcmask 1041408
    %v107 = vsel %vm106, %v71, 0.0
    %v108 = vrot.slane %v107, 4
    %v109 = vadd.f32 %v107, %v108
    %v110 = vrot.slane %v109, 2
    %v111 = vadd.f32 %v109, %v110
    %v112 = vrot.slane %v111, 1
    %v113 = vadd.f32 %v111, %v112
    %v114 = vsel %vm106, %v79, 0.0
    %v115 = vrot.slane %v114, 4
    %v116 = vadd.f32 %v114, %v115
    %v117 = vrot.slane %v116, 2
    %v118 = vadd.f32 %v116, %v117
    %v119 = vrot.slane %v118, 1
    %v120 = vadd.f32 %v118, %v119
    %v121 = vsel %vm106, %v78, 0.0
    %v122 = vrot.slane %v121, 4
    %v123 = vadd.f32 %v121, %v122
    %v124 = vrot.slane %v123, 2
    %v125 = vadd.f32 %v123, %v124
    %v126 = vrot.slane %v125, 1
    %v127 = vadd.f32 %v125, %v126
    %v128 = vsel %vm106, %v80, 0.0
    %v129 = vrot.slane %v128, 4
    %v130 = vadd.f32 %v128, %v129
    %v131 = vrot.slane %v130, 2
    %v132 = vadd.f32 %v130, %v131
    %v133 = vrot.slane %v132, 1
    %v134 = vadd.f32 %v132, %v133
    %v135 = vsel %vm106, %v88, 0.0
    %v136 = vrot.slane %v135, 4
    %v137 = vadd.f32 %v135, %v136
    %v138 = vrot.slane %v137, 2
    %v139 = vadd.f32 %v137, %v138
    %v140 = vrot.slane %v139, 1
    %v141 = vadd.f32 %v139, %v140
    %v142 = vsel %vm106, %v96, 0.0
    %v143 = vrot.slane %v142, 4
    %v144 = vadd.f32 %v142, %v143
    %v145 = vrot.slane %v144, 2
    %v146 = vadd.f32 %v144, %v145
    %v147 = vrot.slane %v146, 1
    %v148 = vadd.f32 %v146, %v147
    %v149 = vsel %vm106, %v95, 0.0
    %v150 = vrot.slane %v149, 4
    %v151 = vadd.f32 %v149, %v150
    %v152 = vrot.slane %v151, 2
    %v153 = vadd.f32 %v151, %v152
    %v154 = vrot.slane %v153, 1
    %v155 = vadd.f32 %v153, %v154
    %v156 = vsel %vm106, %v97, 0.0
    %v157 = vrot.slane %v156, 4
    %v158 = vadd.f32 %v156, %v157
    %v159 = vrot.slane %v158, 2
    %v160 = vadd.f32 %v158, %v159
    %v161 = vrot.slane %v160, 1
    %v162 = vadd.f32 %v160, %v161
    %v171 = vcombine.low %v113, %v120
    %v172 = vcombine.low %v127, %v134
    %v173 = vcombine.low %v141, %v148
    %v174 = vcombine.low %v155, %v162
    %v176 = vunpack.c.l.s4 1966171168
    %v177 = vunpack.c.0.s8 %v176
    %v178 = vlaneseq
    %v179 = vshrl.u32 %v178, 7
    %v180 = vsub.s32 %v177, %v179
    %v181 = vrot.slane %v171, %v180
    %v183 = vunpack.c.l.s4 1966171168
    %v184 = vunpack.c.0.s8 %v183
    %v185 = vlaneseq
    %v186 = vshrl.u32 %v185, 7
    %v187 = vsub.s32 %v184, %v186
    %v188 = vrot.slane %v172, %v187
    %v190 = vunpack.c.l.s4 1966171168
    %v191 = vunpack.c.0.s8 %v190
    %v192 = vlaneseq
    %v193 = vshrl.u32 %v192, 7
    %v194 = vsub.s32 %v191, %v193
    %v195 = vrot.slane %v173, %v194
    %v197 = vunpack.c.l.s4 1966171168
    %v198 = vunpack.c.0.s8 %v197
    %v199 = vlaneseq
    %v200 = vshrl.u32 %v199, 7
    %v201 = vsub.s32 %v198, %v200
    %v202 = vrot.slane %v174, %v201
    %v203 = vcombine.low %v181, %v188
    %v204 = vcombine.low %v195, %v202
    %v206 = vunpack.c.l.s4 1966171168
    %v207 = vunpack.c.0.s8 %v206
    %v208 = vlaneseq
    %v209 = vshrl.u32 %v208, 7
    %v210 = vsub.s32 %v207, %v209
    %v211 = vrot.slane %v203, %v210
    %v213 = vunpack.c.l.s4 1966171168
    %v214 = vunpack.c.0.s8 %v213
    %v215 = vlaneseq
    %v216 = vshrl.u32 %v215, 7
    %v217 = vsub.s32 %v214, %v216
    %v218 = vrot.slane %v204, %v217
    %v219 = vcombine.low %v211, %v218
    %221 = vst [vmem:[#allocation7] sm:$0xff] %v219
    // Predicated region
    $region18: #{tpu_custom_call.1} parent=1 // pred_check
      _
    $region19: #{tpu_custom_call.1} parent=1 // pred_check_branch
      %223 = sbr.rel (0) target = $region21
    $region20: #{tpu_custom_call.1} parent=1 // pred_region
      %s225 = ssub.s32 128, 128
      %226 = vsyncadd [#allocation4], %s225
      %s228 = sshll.u32 [#allocation7], 4
      %s229 = int_to_ptr.vmem [resolvable:$true] %s228
      %231 = dma.vmem_to_hbm [thread:$0]  %s229, 128, %s2, [#allocation4]
    $region21: #{tpu_custom_call.1} parent=1 // pred_fallthru
      _
    // Predicated region
    $region22: #{tpu_custom_call.1} parent=1 // pred_check
      _
    $region23: #{tpu_custom_call.1} parent=1 // pred_check_branch
      %233 = sbr.rel (0) target = $region25
    $region24: #{tpu_custom_call.1} parent=1 // pred_region
      %234 = dma.done [#allocation4], 128
    $region25: #{tpu_custom_call.1} parent=1 // pred_fallthru
      _
    %235 = vsyncpa [#allocation3], 1
    %236 = vsyncpa [#allocation6], 1
    %237 = vsyncpa [#allocation4], 1

</llo_original>
